<compile_context>
chip_gen: v6e
topology: v6e:2x2x1
jax: 0.10.0
libtpu: 0.0.40
codegen_flags: <defaults>
</compile_context>

<pallas_src>
import jax
import jax.numpy as jnp
from jax import lax
from jax.experimental import pallas as pl
from jax.experimental.pallas import tpu as pltpu


def _round_up(x, m):
    return ((x + m - 1) // m) * m


def _pad2d(x, rows, cols):
    r, c = x.shape
    if r == rows and c == cols:
        return x
    return jnp.pad(x, ((0, rows - r), (0, cols - c)))


# ---------------------------------------------------------------------------
# Fused kernel: grid = (phase, node_tile)
#   phase 0: G += adj_tile^T @ emb_tile           (G resident in VMEM scratch)
#   phase 1: out_tile = adj_tile @ G
# ---------------------------------------------------------------------------
def _hgnn_fused_kernel(adj_ref, emb_ref, out_ref, g_ref):
    phase = pl.program_id(0)
    i = pl.program_id(1)

    @pl.when(jnp.logical_and(phase == 0, i == 0))
    def _():
        g_ref[...] = jnp.zeros_like(g_ref)

    @pl.when(phase == 0)
    def _():
        # Contract the node axis (axis 0 of both tiles) -> adj_tile.T @ emb_tile,
        # without an explicit transpose (MXU transposed-operand path).
        g_ref[...] += lax.dot_general(
            adj_ref[...], emb_ref[...],
            dimension_numbers=(((0,), (0,)), ((), ())),
            preferred_element_type=jnp.float32)

    @pl.when(phase == 1)
    def _():
        g = g_ref[...]
        if g.dtype != adj_ref.dtype:          # static dtype check at trace time
            g = g.astype(adj_ref.dtype)
        out_ref[...] = lax.dot_general(
            adj_ref[...], g,
            dimension_numbers=(((1,), (0,)), ((), ())),
            preferred_element_type=jnp.float32).astype(out_ref.dtype)


def _hgnn_fused(adj, embeds, *, tm=256):
    N, E = adj.shape
    N2, D = embeds.shape
    assert N == N2
    out_dtype = embeds.dtype

    tm = min(tm, _round_up(N, 8))
    n_pad = _round_up(N, tm)
    e_pad = _round_up(E, 128)
    d_pad = _round_up(D, 128)

    adj_p = _pad2d(adj, n_pad, e_pad)
    emb_p = _pad2d(embeds, n_pad, d_pad)
    n_i = n_pad // tm

    # VMEM budget: G scratch + double-buffered adj/embeds inputs + output tile.
    a_item = jnp.dtype(adj.dtype).itemsize
    e_item = jnp.dtype(embeds.dtype).itemsize
    o_item = jnp.dtype(out_dtype).itemsize
    need = (e_pad * d_pad * 4
            + 2 * tm * e_pad * a_item
            + 2 * tm * d_pad * e_item
            + 2 * tm * d_pad * o_item)
    vmem_limit = int(min(max(need * 2, 32 * 2**20), 56 * 2**20))

    out = pl.pallas_call(
        _hgnn_fused_kernel,
        out_shape=jax.ShapeDtypeStruct((n_pad, d_pad), out_dtype),
        grid_spec=pltpu.PrefetchScalarGridSpec(
            num_scalar_prefetch=0,
            grid=(2, n_i),
            in_specs=[
                # adj row-tile, full (padded) hyperedge width.
                pl.BlockSpec((tm, e_pad), lambda p, i: (i, 0)),
                # embeds row-tile; only needed in phase 0 -> pin to block 0 in phase 1.
                pl.BlockSpec((tm, d_pad), lambda p, i: (i * (1 - p), 0)),
            ],
            # Output stays on block 0 during phase 0 (never written), then walks
            # the node tiles in phase 1.  Each HBM write-back carries final data.
            out_specs=pl.BlockSpec((tm, d_pad), lambda p, i: (i * p, 0)),
            scratch_shapes=[pltpu.VMEM((e_pad, d_pad), jnp.float32)],
        ),
        compiler_params=pltpu.CompilerParams(
            # Both axes carry state (G scratch / accumulation) -> sequential.
            dimension_semantics=("arbitrary", "arbitrary"),
            vmem_limit_bytes=vmem_limit),
    )(adj_p, emb_p)
    return out[:N, :D]


# ---------------------------------------------------------------------------
# Two-pass fallback (edge_embeds too large for VMEM): tiled matmuls that
# accumulate directly into the f32 output block (no separate acc scratch).
# ---------------------------------------------------------------------------
def _mm_ta_kernel(a_ref, b_ref, o_ref):        # o = a.T @ b, a tile is (tk, tm)
    @pl.when(pl.program_id(2) == 0)
    def _():
        o_ref[...] = jnp.zeros_like(o_ref)
    o_ref[...] += lax.dot_general(
        a_ref[...], b_ref[...],
        dimension_numbers=(((0,), (0,)), ((), ())),
        preferred_element_type=jnp.float32)


def _mm_kernel(a_ref, b_ref, o_ref):           # o = a @ b, a tile is (tm, tk)
    @pl.when(pl.program_id(2) == 0)
    def _():
        o_ref[...] = jnp.zeros_like(o_ref)
    o_ref[...] += lax.dot_general(
        a_ref[...], b_ref[...],
        dimension_numbers=(((1,), (0,)), ((), ())),
        preferred_element_type=jnp.float32)


def _matmul_padded(a, b, *, transpose_a=False, tm=256, tn=256, tk=512):
    if transpose_a:
        K, M = a.shape
    else:
        M, K = a.shape
    K2, N = b.shape
    assert K == K2

    tm = min(tm, _round_up(M, 128))
    tn = min(tn, _round_up(N, 128))
    tk = min(tk, _round_up(K, 128))
    m_pad, n_pad, k_pad = _round_up(M, tm), _round_up(N, tn), _round_up(K, tk)

    if transpose_a:
        a_p = _pad2d(a, k_pad, m_pad)
        a_spec = pl.BlockSpec((tk, tm), lambda i, j, k: (k, i))
        kern = _mm_ta_kernel
    else:
        a_p = _pad2d(a, m_pad, k_pad)
        a_spec = pl.BlockSpec((tm, tk), lambda i, j, k: (i, k))
        kern = _mm_kernel
    b_p = _pad2d(b, k_pad, n_pad)

    out = pl.pallas_call(
        kern,
        out_shape=jax.ShapeDtypeStruct((m_pad, n_pad), jnp.float32),
        grid_spec=pltpu.PrefetchScalarGridSpec(
            num_scalar_prefetch=0,
            grid=(m_pad // tm, n_pad // tn, k_pad // tk),
            in_specs=[a_spec,
                      pl.BlockSpec((tk, tn), lambda i, j, k: (k, j))],
            out_specs=pl.BlockSpec((tm, tn), lambda i, j, k: (i, j)),
        ),
        compiler_params=pltpu.CompilerParams(
            dimension_semantics=("parallel", "parallel", "arbitrary"),
            vmem_limit_bytes=48 * 2**20),
    )(a_p, b_p)
    return out[:M, :N]


# ---------------------------------------------------------------------------
# HGNNLayer forward
# ---------------------------------------------------------------------------
def hgnn_layer(adj, embeds, *, tm=256):
    """adj: [N, E], embeds: [N, D] -> hyper_embeds: [N, D].

    Matches HGNNLayer.forward: adj @ (adj.T @ embeds); the LeakyReLU defined in
    __init__ is never used in forward and is therefore omitted.
    """
    _, E = adj.shape
    _, D = embeds.shape
    g_bytes = _round_up(E, 128) * _round_up(D, 128) * 4
    if g_bytes <= 16 * 2**20:
        # edge_embeds fits comfortably in VMEM on v5e/v6e/v7x -> fused single pass.
        return _hgnn_fused(adj, embeds, tm=tm)
    # Fallback: two tiled matmuls with the intermediate in HBM.
    edge = _matmul_padded(adj, embeds, transpose_a=True)
    hyper = _matmul_padded(adj, edge, transpose_a=False)
    return hyper.astype(embeds.dtype)


if __name__ == "__main__":
    key = jax.random.PRNGKey(0)
    k_adj, k_emb = jax.random.split(key)

    # Small, deliberately non-tile-aligned shapes: N nodes, E hyperedges, D hidden.
    N, E, D = 300, 200, 96
    adj = jax.random.uniform(k_adj, (N, E), dtype=jnp.float32)
    embeds = jax.random.normal(k_emb, (N, D), dtype=jnp.float32)

    out = jax.block_until_ready(hgnn_layer(adj, embeds))

    ref = adj @ (adj.T @ embeds)
    assert out.shape == (N, D)
    rel_err = float(jnp.max(jnp.abs(out - ref)) / (jnp.max(jnp.abs(ref)) + 1e-6))
    assert rel_err < 1e-3, f"fused path rel_err={rel_err}"

    # Exercise the two-pass fallback path once for coverage.
    edge = _matmul_padded(adj, embeds, transpose_a=True)
    hyper = jax.block_until_ready(_matmul_padded(adj, edge, transpose_a=False))
    rel_err2 = float(jnp.max(jnp.abs(hyper - ref)) / (jnp.max(jnp.abs(ref)) + 1e-6))
    assert rel_err2 < 1e-3, f"fallback path rel_err={rel_err2}"

    print("KERNEL_OK")
</pallas_src>

<mosaic_0001>
module attributes {stable_mosaic.version = 11 : i64} {
  func.func @_hgnn_fused_kernel(%arg0: i32, %arg1: i32, %arg2: memref<256x256xf32, #tpu.memory_space<vmem>>, %arg3: memref<256x128xf32, #tpu.memory_space<vmem>>, %arg4: memref<256x128xf32, #tpu.memory_space<vmem>>, %arg5: memref<256x128xf32, #tpu.memory_space<vmem>>) attributes {dimension_semantics = [#tpu.dimension_semantics<arbitrary>, #tpu.dimension_semantics<arbitrary>], iteration_bounds = array<i64: 2, 2>, scalar_prefetch = 0 : i64, scratch_operands = 1 : i64, tpu.core_type = #tpu.core_type<tc>, window_params = [{transform_indices = @transform_0, window_bounds = array<i64: 256, 256>}, {transform_indices = @transform_1, window_bounds = array<i64: 256, 128>}, {transform_indices = @transform_2, window_bounds = array<i64: 256, 128>}]} {
    %c0_i32 = arith.constant 0 : i32
    %0 = arith.cmpi eq, %arg0, %c0_i32 : i32
    %c0_i32_0 = arith.constant 0 : i32
    %1 = arith.cmpi eq, %arg1, %c0_i32_0 : i32
    %2 = arith.andi %0, %1 : i1
    %3 = arith.extui %2 : i1 to i32
    %c0_i32_1 = arith.constant 0 : i32
    %4 = arith.cmpi ne, %3, %c0_i32_1 : i32
    scf.if %4 {
      %cst = arith.constant 0.000000e+00 : f32
      %11 = vector.broadcast %cst : f32 to vector<256x128xf32>
      %c0 = arith.constant 0 : index
      %c0_5 = arith.constant 0 : index
      %12 = vector.load %arg5[%c0, %c0_5] : memref<256x128xf32, #tpu.memory_space<vmem>>, vector<256x128xf32>
      tpu.vector_store %arg5[%c0, %c0_5], %11 {strides = array<i32>} : memref<256x128xf32, #tpu.memory_space<vmem>>, vector<256x128xf32>,
    } else {
    }
    %c0_i32_2 = arith.constant 0 : i32
    %5 = arith.cmpi eq, %arg0, %c0_i32_2 : i32
    %6 = arith.extui %5 : i1 to i32
    %c0_i32_3 = arith.constant 0 : i32
    %7 = arith.cmpi ne, %6, %c0_i32_3 : i32
    scf.if %7 {
      %c0 = arith.constant 0 : index
      %c0_5 = arith.constant 0 : index
      %11 = vector.load %arg5[%c0, %c0_5] : memref<256x128xf32, #tpu.memory_space<vmem>>, vector<256x128xf32>
      %c0_6 = arith.constant 0 : index
      %c0_7 = arith.constant 0 : index
      %12 = vector.load %arg2[%c0_6, %c0_7] : memref<256x256xf32, #tpu.memory_space<vmem>>, vector<256x256xf32>
      %c0_8 = arith.constant 0 : index
      %c0_9 = arith.constant 0 : index
      %13 = vector.load %arg3[%c0_8, %c0_9] : memref<256x128xf32, #tpu.memory_space<vmem>>, vector<256x128xf32>
      %cst = arith.constant dense<0.000000e+00> : vector<256x128xf32>
      %14 = tpu.matmul %12, %13, %cst {dimension_numbers = #tpu.dot_dimension_numbers<[0], [0], [1], [1], [0, 1, 1, 1], [], []>} : vector<256x256xf32>, vector<256x128xf32>, vector<256x128xf32> -> vector<256x128xf32>
      %15 = arith.addf %11, %14 : vector<256x128xf32>
      %c0_10 = arith.constant 0 : index
      %c0_11 = arith.constant 0 : index
      %16 = vector.load %arg5[%c0_10, %c0_11] : memref<256x128xf32, #tpu.memory_space<vmem>>, vector<256x128xf32>
      tpu.vector_store %arg5[%c0_10, %c0_11], %15 {strides = array<i32>} : memref<256x128xf32, #tpu.memory_space<vmem>>, vector<256x128xf32>,
    } else {
    }
    %c1_i32 = arith.constant 1 : i32
    %8 = arith.cmpi eq, %arg0, %c1_i32 : i32
    %9 = arith.extui %8 : i1 to i32
    %c0_i32_4 = arith.constant 0 : i32
    %10 = arith.cmpi ne, %9, %c0_i32_4 : i32
    scf.if %10 {
      %c0 = arith.constant 0 : index
      %c0_5 = arith.constant 0 : index
      %11 = vector.load %arg5[%c0, %c0_5] : memref<256x128xf32, #tpu.memory_space<vmem>>, vector<256x128xf32>
      %c0_6 = arith.constant 0 : index
      %c0_7 = arith.constant 0 : index
      %12 = vector.load %arg2[%c0_6, %c0_7] : memref<256x256xf32, #tpu.memory_space<vmem>>, vector<256x256xf32>
      %cst = arith.constant dense<0.000000e+00> : vector<256x128xf32>
      %13 = tpu.matmul %12, %11, %cst {dimension_numbers = #tpu.dot_dimension_numbers<[1], [0], [0], [1], [0, 0, 1, 1], [], []>} : vector<256x256xf32>, vector<256x128xf32>, vector<256x128xf32> -> vector<256x128xf32>
      %c0_8 = arith.constant 0 : index
      %c0_9 = arith.constant 0 : index
      %14 = vector.load %arg4[%c0_8, %c0_9] : memref<256x128xf32, #tpu.memory_space<vmem>>, vector<256x128xf32>
      tpu.vector_store %arg4[%c0_8, %c0_9], %13 {strides = array<i32>} : memref<256x128xf32, #tpu.memory_space<vmem>>, vector<256x128xf32>,
    } else {
    }
    return
  }
  func.func @transform_0(%arg0: i32, %arg1: i32) -> (i32, i32) {
    %c0_i32 = arith.constant 0 : i32
    %c0_i32_0 = arith.constant 0 : i32
    return %arg1, %c0_i32 : i32, i32
  }
  func.func @transform_1(%arg0: i32, %arg1: i32) -> (i32, i32) {
    %c1_i32 = arith.constant 1 : i32
    %0 = arith.subi %c1_i32, %arg0 : i32
    %1 = arith.muli %arg1, %0 : i32
    %c0_i32 = arith.constant 0 : i32
    %c0_i32_0 = arith.constant 0 : i32
    return %1, %c0_i32 : i32, i32
  }
  func.func @transform_2(%arg0: i32, %arg1: i32) -> (i32, i32) {
    %0 = arith.muli %arg1, %arg0 : i32
    %c0_i32 = arith.constant 0 : i32
    %c0_i32_0 = arith.constant 0 : i32
    return %0, %c0_i32 : i32, i32
  }
}

</mosaic_0001>

<llo_original>
// kernel: tpu_custom_call.1
$region0: #{tpu_custom_call.1}
  #allocation0 [shape = 'u32[]', space=smem, size = 0x4, offset = 0x4, fixed_abs, tag = 'smem constant byte address 0x4 - core index']
  #allocation1 [shape = 'u32[144,128]{1,0:T(1,128)}', space=vmem, size = 0x12000, scoped, tag = 'internal scratch']
  #allocation2 [shape = 'f32[256,128]{1,0:T(8,128)}', space=vmem, size = 0x20000, scoped, tag = 'scratch operand']
  %s0 = inlined_call_operand.hbm [shape: f32[512,256], index: 0, kind: input, shape index: {}]
  %s1 = inlined_call_operand.hbm [shape: f32[512,128], index: 1, kind: input, shape index: {}]
  %s2 = inlined_call_operand.hbm [shape: f32[512,128], index: 2, kind: output, shape index: {}]
  %s3 = sld [smem:[#allocation0]]
  $region61: #{tpu_custom_call.1} parent=0
    _
  %s5 = ssub.s32 1, %s3
  %s6 = scalar_select 0, %s5, %s3
  $region1: #{tpu_custom_call.1} parent=0
    #allocation3 [shape = 'u8[524288]{0}', space=vmem, size = 0x80000, scoped, tag = 'input window, operand 0']
    #allocation4 [shape = 's32[2]{0}', space=sflag, size = 0x8, scoped, tag = 'scoped memory for tpu_custom_call.1']
    #allocation5 [shape = 's32[2]{0}', space=sflag, size = 0x8, scoped, tag = 'scoped memory for tpu_custom_call.1']
    #allocation6 [shape = 'u8[262144]{0}', space=vmem, size = 0x40000, scoped, tag = 'input window, operand 1']
    #allocation7 [shape = 's32[2]{0}', space=sflag, size = 0x8, scoped, tag = 'scoped memory for tpu_custom_call.1']
    #allocation8 [shape = 'u8[262144]{0}', space=vmem, size = 0x40000, scoped, tag = 'output window, operand 0']
    %7 = vsyncpa [#allocation4], 0
    %s8 = scalar_lea.sflag [#allocation4], 1
    %9 = vsyncpa %s8, 0
    %10 = vsyncpa [#allocation7], 0
    %s11 = scalar_lea.sflag [#allocation7], 1
    %12 = vsyncpa %s11, 0
    %13 = vsyncpa [#allocation5], 0
    %s14 = scalar_lea.sflag [#allocation5], 1
    %15 = vsyncpa %s14, 0
    loop: start=0, step=1, limit=6
    $region2: #{tpu_custom_call.1} parent=1 // loop_pre_header
      _
    $region3: #{tpu_custom_call.1} parent=1 // loop_header
      %s17 = sphi 0, %s21
      %p18 = scmp.ge.s32.totalorder %s17, 6
      %s24 = sphi 0, %s36
      %s25 = sphi 0, %s32
      %s26 = sphi 0, %s24
      %s27 = sphi 0, %s25
      %s28 = sphi 0, %s26
      %s29 = sphi 0, %s27
      %s39 = sphi 0, %s41
      %s42 = sphi 0, %s39
      %s43 = sphi 0, %s42
      %s59 = sphi 0, %s43
      %s69 = sphi 0, %s71
      %s72 = sphi 0, %s69
      %s73 = sphi 0, %s72
      %s89 = sphi 0, %s73
      %s97 = sphi 0, %s99
      %s100 = sphi 0, %s97
      %s101 = sphi 0, %s100
      %s117 = sphi 0, %s101
    $region4: #{tpu_custom_call.1} parent=1 // loop_header_branch
      %20 = sbr.rel (%p18) target = $region8
    $region5: #{tpu_custom_call.1} parent=1 // loop_body
      %s22 = ssub.s32 %s17, 1
      %s23 = ssub.s32 %s17, 2
      %s30 = sadd.s32 1, %s25
      %p31 = scmp.ge.s32.totalorder %s30, 2
      %s32 = scalar_select %p31, 0, %s30
      %s33 = sadd.s32 1, %s24
      %s34 = scalar_select %p31, %s33, %s24
      %p35 = scmp.ge.s32.totalorder %s34, 2
      %s36 = scalar_select %p35, 0, %s34
      %s37 = ssub.s32 %s25, %s32
      %p38 = scmp.eq.s32.totalorder %s37, 0
      %s40 = sadd.s32 %s39, 1
      %s41 = scalar_select %p38, %s39, %s40
      %p44 = pneg %p38
      %p45 = scmp.eq.s32.totalorder %s17, 3
      %p46 = por %p44, %p45
      %p47 = scmp.ne.s32.totalorder %s39, %s42
      %p48 = scmp.eq.s32.totalorder %s17, 0
      %p49 = por %p47, %p48
      %p50 = scmp.ne.s32.totalorder %s39, %s42
      %p51 = scmp.eq.s32.totalorder %s22, 3
      %p52 = por %p50, %p51
      %p53 = scmp.ne.s32.totalorder %s42, %s43
      %p54 = scmp.eq.s32.totalorder %s22, 0
      %p55 = por %p53, %p54
      %p56 = scmp.ne.s32.totalorder %s42, %s43
      %p57 = scmp.eq.s32.totalorder %s23, 3
      %p58 = por %p56, %p57
      %p60 = scmp.ne.s32.totalorder %s43, %s59
      %p61 = scmp.eq.s32.totalorder %s23, 0
      %p62 = por %p60, %p61
      %s63 = ssub.s32 1, %s24
      %s64 = smul.u32 %s25, %s63
      %s65 = ssub.s32 1, %s36
      %s66 = smul.u32 %s32, %s65
      %s67 = ssub.s32 %s64, %s66
      %p68 = scmp.eq.s32.totalorder %s67, 0
      %s70 = sadd.s32 %s69, 1
      %s71 = scalar_select %p68, %s69, %s70
      %p74 = pneg %p68
      %p75 = scmp.eq.s32.totalorder %s17, 3
      %p76 = por %p74, %p75
      %p77 = scmp.ne.s32.totalorder %s69, %s72
      %p78 = scmp.eq.s32.totalorder %s17, 0
      %p79 = por %p77, %p78
      %p80 = scmp.ne.s32.totalorder %s69, %s72
      %p81 = scmp.eq.s32.totalorder %s22, 3
      %p82 = por %p80, %p81
      %p83 = scmp.ne.s32.totalorder %s72, %s73
      %p84 = scmp.eq.s32.totalorder %s22, 0
      %p85 = por %p83, %p84
      %p86 = scmp.ne.s32.totalorder %s72, %s73
      %p87 = scmp.eq.s32.totalorder %s23, 3
      %p88 = por %p86, %p87
      %p90 = scmp.ne.s32.totalorder %s73, %s89
      %p91 = scmp.eq.s32.totalorder %s23, 0
      %p92 = por %p90, %p91
      %s93 = smul.u32 %s25, %s24
      %s94 = smul.u32 %s32, %s36
      %s95 = ssub.s32 %s93, %s94
      %p96 = scmp.eq.s32.totalorder %s95, 0
      %s98 = sadd.s32 %s97, 1
      %s99 = scalar_select %p96, %s97, %s98
      %p102 = pneg %p96
      %p103 = scmp.eq.s32.totalorder %s17, 3
      %p104 = por %p102, %p103
      %p105 = scmp.ne.s32.totalorder %s97, %s100
      %p106 = scmp.eq.s32.totalorder %s17, 0
      %p107 = por %p105, %p106
      %p108 = scmp.ne.s32.totalorder %s97, %s100
      %p109 = scmp.eq.s32.totalorder %s22, 3
      %p110 = por %p108, %p109
      %p111 = scmp.ne.s32.totalorder %s100, %s101
      %p112 = scmp.eq.s32.totalorder %s22, 0
      %p113 = por %p111, %p112
      %p114 = scmp.ne.s32.totalorder %s100, %s101
      %p115 = scmp.eq.s32.totalorder %s23, 3
      %p116 = por %p114, %p115
      %p118 = scmp.ne.s32.totalorder %s101, %s117
      %p119 = scmp.eq.s32.totalorder %s23, 0
      %p120 = por %p118, %p119
      %p121 = scmp.le.s32.totalorder 1, %s17
      %p122 = scmp.lt.s32.totalorder %s17, 5
      %p123 = pnand %p121, %p122
      %p124 = pneg %p123
      // Predicated region
      $region9: #{tpu_custom_call.1} parent=5 // pred_check
        _
      $region10: #{tpu_custom_call.1} parent=5 // pred_check_branch
        %126 = sbr.rel (%p123) target = $region12
      $region11: #{tpu_custom_call.1} parent=5 // pred_region
        %s127 = ssub.s32 %s17, 1
      $region12: #{tpu_custom_call.1} parent=5 // pred_fallthru
        _
      %p128 = scmp.lt.s32.totalorder %s17, 4
      // Predicated region
      $region13: #{tpu_custom_call.1} parent=5 // pred_check
        %p129 = pneg %p128
      $region14: #{tpu_custom_call.1} parent=5 // pred_check_branch
        %131 = sbr.rel (%p129) target = $region16
      $region15: #{tpu_custom_call.1} parent=5 // pred_region
        // Predicated region
        $region17: #{tpu_custom_call.1} parent=15 // pred_check
          %p132 = pneg %p49
        $region18: #{tpu_custom_call.1} parent=15 // pred_check_branch
          %134 = sbr.rel (%p132) target = $region20
        $region19: #{tpu_custom_call.1} parent=15 // pred_region
          %s135 = sand.u32 %s39, 1
          %s136 = scalar_lea.sflag [#allocation4], %s135
          %s137 = sand.u32 %s39, 1
          %s138 = smul.addr %s137, 512
          %s139 = scalar_lea.vmem [#allocation3], %s138
          %s140 = smul.u32 32, %s25
          %s142 = ssub.s32 8192, 8192
          %143 = vsyncadd %s136, %s142
          %s144 = smul.addr %s140, 2
          %s145 = smul.addr %s144, 128
          %s146 = scalar_lea.hbm %s0, %s145
          %s147 = sshll.u32 %s139, 4
          %s148 = int_to_ptr.vmem [resolvable:$true] %s147
          %153 = dma.hbm_to_vmem [thread:$0]  %s146, 8192, %s148, %s136, 256, 256, 16
        $region20: #{tpu_custom_call.1} parent=15 // pred_fallthru
          _
        // Predicated region
        $region21: #{tpu_custom_call.1} parent=15 // pred_check
          %p154 = pneg %p79
        $region22: #{tpu_custom_call.1} parent=15 // pred_check_branch
          %156 = sbr.rel (%p154) target = $region24
        $region23: #{tpu_custom_call.1} parent=15 // pred_region
          %s157 = sand.u32 %s69, 1
          %s158 = scalar_lea.sflag [#allocation7], %s157
          %s159 = sand.u32 %s69, 1
          %s160 = smul.addr %s159, 256
          %s161 = scalar_lea.vmem [#allocation6], %s160
          %s162 = ssub.s32 1, %s24
          %s163 = smul.u32 %s25, %s162
          %s164 = smul.u32 32, %s163
          %s166 = ssub.s32 4096, 4096
          %167 = vsyncadd %s158, %s166
          %s168 = smul.addr %s164, 128
          %s169 = scalar_lea.hbm %s1, %s168
          %s170 = sshll.u32 %s161, 4
          %s171 = int_to_ptr.vmem [resolvable:$true] %s170
          %176 = dma.hbm_to_vmem [thread:$0]  %s169, 4096, %s171, %s158, 128, 128, 8
        $region24: #{tpu_custom_call.1} parent=15 // pred_fallthru
          _
      $region16: #{tpu_custom_call.1} parent=5 // pred_fallthru
        _
      %p177 = scmp.le.s32.totalorder 1, %s17
      %p178 = scmp.lt.s32.totalorder %s17, 5
      %p179 = pnand %p177, %p178
      %p180 = pneg %p179
      // Predicated region
      $region25: #{tpu_custom_call.1} parent=5 // pred_check
        _
      $region26: #{tpu_custom_call.1} parent=5 // pred_check_branch
        %182 = sbr.rel (%p179) target = $region28
      $region27: #{tpu_custom_call.1} parent=5 // pred_region
        %s183 = ssub.s32 %s17, 1
        %s184 = sand.u32 %s42, 1
        %s185 = scalar_lea.sflag [#allocation4], %s184
        %s186 = sand.u32 %s42, 1
        %s187 = smul.addr %s186, 512
        %s188 = scalar_lea.vmem [#allocation3], %s187
        // Predicated region
        $region29: #{tpu_custom_call.1} parent=27 // pred_check
          %p189 = pneg %p55
        $region30: #{tpu_custom_call.1} parent=27 // pred_check_branch
          %191 = sbr.rel (%p189) target = $region32
        $region31: #{tpu_custom_call.1} parent=27 // pred_region
          %192 = dma.done %s185, 8192
        $region32: #{tpu_custom_call.1} parent=27 // pred_fallthru
          _
        %s193 = sand.u32 %s72, 1
        %s194 = scalar_lea.sflag [#allocation7], %s193
        %s195 = sand.u32 %s72, 1
        %s196 = smul.addr %s195, 256
        %s197 = scalar_lea.vmem [#allocation6], %s196
        // Predicated region
        $region33: #{tpu_custom_call.1} parent=27 // pred_check
          %p198 = pneg %p85
        $region34: #{tpu_custom_call.1} parent=27 // pred_check_branch
          %200 = sbr.rel (%p198) target = $region36
        $region35: #{tpu_custom_call.1} parent=27 // pred_region
          %201 = dma.done %s194, 4096
        $region36: #{tpu_custom_call.1} parent=27 // pred_fallthru
          _
        %s202 = sand.u32 %s42, 1
        %s203 = scalar_lea.sflag [#allocation4], %s202
        %s204 = sand.u32 %s42, 1
        %s205 = smul.addr %s204, 512
        %s206 = scalar_lea.vmem [#allocation3], %s205
        %p207 = pneg %p55
        %p208 = pneg %p52
        %s209 = sand.u32 %s72, 1
        %s210 = scalar_lea.sflag [#allocation7], %s209
        %s211 = sand.u32 %s72, 1
        %s212 = smul.addr %s211, 256
        %s213 = scalar_lea.vmem [#allocation6], %s212
        %p214 = pneg %p85
        %p215 = pneg %p82
        %p216 = pneg %p113
        %p217 = pneg %p110
        %s218 = sand.u32 %s100, 1
        %s219 = scalar_lea.sflag [#allocation5], %s218
        %s220 = sand.u32 %s100, 1
        %s221 = smul.addr %s220, 256
        %s222 = scalar_lea.vmem [#allocation8], %s221
        %s223 = smul.u32 32, %s27
        %s224 = ssub.s32 1, %s26
        %s225 = smul.u32 %s27, %s224
        %s226 = smul.u32 32, %s225
        %s227 = smul.u32 %s27, %s26
        %s228 = smul.u32 32, %s227
        %p229 = scmp.eq.s32.totalorder %s26, 0
        %p230 = scmp.eq.s32.totalorder %s27, 0
        %p231 = pnand %p229, %p230
        %p232 = pneg %p231
        // Predicated region
        $region37: #{tpu_custom_call.1} parent=27 // pred_check
          _
        $region38: #{tpu_custom_call.1} parent=27 // pred_check_branch
          %234 = sbr.rel (%p231) target = $region40
        $region39: #{tpu_custom_call.1} parent=27 // pred_region
          %235 = vst [vmem:[#allocation2] sm:$0xff] 0.0
          %236 = vst [vmem:[#allocation2 + $0x8] sm:$0xff] 0.0
          %237 = vst [vmem:[#allocation2 + $0x10] sm:$0xff] 0.0
          %238 = vst [vmem:[#allocation2 + $0x18] sm:$0xff] 0.0
          %239 = vst [vmem:[#allocation2 + $0x20] sm:$0xff] 0.0
          %240 = vst [vmem:[#allocation2 + $0x28] sm:$0xff] 0.0
          %241 = vst [vmem:[#allocation2 + $0x30] sm:$0xff] 0.0
          %242 = vst [vmem:[#allocation2 + $0x38] sm:$0xff] 0.0
          %243 = vst [vmem:[#allocation2 + $0x40] sm:$0xff] 0.0
          %244 = vst [vmem:[#allocation2 + $0x48] sm:$0xff] 0.0
          %245 = vst [vmem:[#allocation2 + $0x50] sm:$0xff] 0.0
          %246 = vst [vmem:[#allocation2 + $0x58] sm:$0xff] 0.0
          %247 = vst [vmem:[#allocation2 + $0x60] sm:$0xff] 0.0
          %248 = vst [vmem:[#allocation2 + $0x68] sm:$0xff] 0.0
          %249 = vst [vmem:[#allocation2 + $0x70] sm:$0xff] 0.0
          %250 = vst [vmem:[#allocation2 + $0x78] sm:$0xff] 0.0
          %251 = vst [vmem:[#allocation2 + $0x80] sm:$0xff] 0.0
          %252 = vst [vmem:[#allocation2 + $0x88] sm:$0xff] 0.0
          %253 = vst [vmem:[#allocation2 + $0x90] sm:$0xff] 0.0
          %254 = vst [vmem:[#allocation2 + $0x98] sm:$0xff] 0.0
          %255 = vst [vmem:[#allocation2 + $0xa0] sm:$0xff] 0.0
          %256 = vst [vmem:[#allocation2 + $0xa8] sm:$0xff] 0.0
          %257 = vst [vmem:[#allocation2 + $0xb0] sm:$0xff] 0.0
          %258 = vst [vmem:[#allocation2 + $0xb8] sm:$0xff] 0.0
          %259 = vst [vmem:[#allocation2 + $0xc0] sm:$0xff] 0.0
          %260 = vst [vmem:[#allocation2 + $0xc8] sm:$0xff] 0.0
          %261 = vst [vmem:[#allocation2 + $0xd0] sm:$0xff] 0.0
          %262 = vst [vmem:[#allocation2 + $0xd8] sm:$0xff] 0.0
          %263 = vst [vmem:[#allocation2 + $0xe0] sm:$0xff] 0.0
          %264 = vst [vmem:[#allocation2 + $0xe8] sm:$0xff] 0.0
          %265 = vst [vmem:[#allocation2 + $0xf0] sm:$0xff] 0.0
          %266 = vst [vmem:[#allocation2 + $0xf8] sm:$0xff] 0.0
        $region40: #{tpu_custom_call.1} parent=27 // pred_fallthru
          _
        // Predicated region
        $region41: #{tpu_custom_call.1} parent=27 // pred_check
          %p267 = pneg %p229
        $region42: #{tpu_custom_call.1} parent=27 // pred_check_branch
          %269 = sbr.rel (%p267) target = $region44
        $region43: #{tpu_custom_call.1} parent=27 // pred_region
          %v270 = vld [vmem:[#allocation2] sm:$0xff]
          %v271 = vld [vmem:[#allocation2 + $0x8] sm:$0xff]
          %v272 = vld [vmem:[#allocation2 + $0x10] sm:$0xff]
          %v273 = vld [vmem:[#allocation2 + $0x18] sm:$0xff]
          %v274 = vld [vmem:[#allocation2 + $0x20] sm:$0xff]
          %v275 = vld [vmem:[#allocation2 + $0x28] sm:$0xff]
          %v276 = vld [vmem:[#allocation2 + $0x30] sm:$0xff]
          %v277 = vld [vmem:[#allocation2 + $0x38] sm:$0xff]
          %v278 = vld [vmem:[#allocation2 + $0x40] sm:$0xff]
          %v279 = vld [vmem:[#allocation2 + $0x48] sm:$0xff]
          %v280 = vld [vmem:[#allocation2 + $0x50] sm:$0xff]
          %v281 = vld [vmem:[#allocation2 + $0x58] sm:$0xff]
          %v282 = vld [vmem:[#allocation2 + $0x60] sm:$0xff]
          %v283 = vld [vmem:[#allocation2 + $0x68] sm:$0xff]
          %v284 = vld [vmem:[#allocation2 + $0x70] sm:$0xff]
          %v285 = vld [vmem:[#allocation2 + $0x78] sm:$0xff]
          %v286 = vld [vmem:[#allocation2 + $0x80] sm:$0xff]
          %v287 = vld [vmem:[#allocation2 + $0x88] sm:$0xff]
          %v288 = vld [vmem:[#allocation2 + $0x90] sm:$0xff]
          %v289 = vld [vmem:[#allocation2 + $0x98] sm:$0xff]
          %v290 = vld [vmem:[#allocation2 + $0xa0] sm:$0xff]
          %v291 = vld [vmem:[#allocation2 + $0xa8] sm:$0xff]
          %v292 = vld [vmem:[#allocation2 + $0xb0] sm:$0xff]
          %v293 = vld [vmem:[#allocation2 + $0xb8] sm:$0xff]
          %v294 = vld [vmem:[#allocation2 + $0xc0] sm:$0xff]
          %v295 = vld [vmem:[#allocation2 + $0xc8] sm:$0xff]
          %v296 = vld [vmem:[#allocation2 + $0xd0] sm:$0xff]
          %v297 = vld [vmem:[#allocation2 + $0xd8] sm:$0xff]
          %v298 = vld [vmem:[#allocation2 + $0xe0] sm:$0xff]
          %v299 = vld [vmem:[#allocation2 + $0xe8] sm:$0xff]
          %v300 = vld [vmem:[#allocation2 + $0xf0] sm:$0xff]
          %v301 = vld [vmem:[#allocation2 + $0xf8] sm:$0xff]
          %v302 = vld [vmem:[%s188] sm:$0xff]
          %v303 = vld [vmem:[%s188 + $0x8] sm:$0xff]
          %v304 = vld [vmem:[%s188 + $0x10] sm:$0xff]
          %v305 = vld [vmem:[%s188 + $0x18] sm:$0xff]
          %v306 = vld [vmem:[%s188 + $0x20] sm:$0xff]
          %v307 = vld [vmem:[%s188 + $0x28] sm:$0xff]
          %v308 = vld [vmem:[%s188 + $0x30] sm:$0xff]
          %v309 = vld [vmem:[%s188 + $0x38] sm:$0xff]
          %v310 = vld [vmem:[%s188 + $0x40] sm:$0xff]
          %v311 = vld [vmem:[%s188 + $0x48] sm:$0xff]
          %v312 = vld [vmem:[%s188 + $0x50] sm:$0xff]
          %v313 = vld [vmem:[%s188 + $0x58] sm:$0xff]
          %v314 = vld [vmem:[%s188 + $0x60] sm:$0xff]
          %v315 = vld [vmem:[%s188 + $0x68] sm:$0xff]
          %v316 = vld [vmem:[%s188 + $0x70] sm:$0xff]
          %v317 = vld [vmem:[%s188 + $0x78] sm:$0xff]
          %v318 = vld [vmem:[%s188 + $0x80] sm:$0xff]
          %v319 = vld [vmem:[%s188 + $0x88] sm:$0xff]
          %v320 = vld [vmem:[%s188 + $0x90] sm:$0xff]
          %v321 = vld [vmem:[%s188 + $0x98] sm:$0xff]
          %v322 = vld [vmem:[%s188 + $0xa0] sm:$0xff]
          %v323 = vld [vmem:[%s188 + $0xa8] sm:$0xff]
          %v324 = vld [vmem:[%s188 + $0xb0] sm:$0xff]
          %v325 = vld [vmem:[%s188 + $0xb8] sm:$0xff]
          %v326 = vld [vmem:[%s188 + $0xc0] sm:$0xff]
          %v327 = vld [vmem:[%s188 + $0xc8] sm:$0xff]
          %v328 = vld [vmem:[%s188 + $0xd0] sm:$0xff]
          %v329 = vld [vmem:[%s188 + $0xd8] sm:$0xff]
          %v330 = vld [vmem:[%s188 + $0xe0] sm:$0xff]
          %v331 = vld [vmem:[%s188 + $0xe8] sm:$0xff]
          %v332 = vld [vmem:[%s188 + $0xf0] sm:$0xff]
          %v333 = vld [vmem:[%s188 + $0xf8] sm:$0xff]
          %v334 = vld [vmem:[%s188 + $0x100] sm:$0xff]
          %v335 = vld [vmem:[%s188 + $0x108] sm:$0xff]
          %v336 = vld [vmem:[%s188 + $0x110] sm:$0xff]
          %v337 = vld [vmem:[%s188 + $0x118] sm:$0xff]
          %v338 = vld [vmem:[%s188 + $0x120] sm:$0xff]
          %v339 = vld [vmem:[%s188 + $0x128] sm:$0xff]
          %v340 = vld [vmem:[%s188 + $0x130] sm:$0xff]
          %v341 = vld [vmem:[%s188 + $0x138] sm:$0xff]
          %v342 = vld [vmem:[%s188 + $0x140] sm:$0xff]
          %v343 = vld [vmem:[%s188 + $0x148] sm:$0xff]
          %v344 = vld [vmem:[%s188 + $0x150] sm:$0xff]
          %v345 = vld [vmem:[%s188 + $0x158] sm:$0xff]
          %v346 = vld [vmem:[%s188 + $0x160] sm:$0xff]
          %v347 = vld [vmem:[%s188 + $0x168] sm:$0xff]
          %v348 = vld [vmem:[%s188 + $0x170] sm:$0xff]
          %v349 = vld [vmem:[%s188 + $0x178] sm:$0xff]
          %v350 = vld [vmem:[%s188 + $0x180] sm:$0xff]
          %v351 = vld [vmem:[%s188 + $0x188] sm:$0xff]
          %v352 = vld [vmem:[%s188 + $0x190] sm:$0xff]
          %v353 = vld [vmem:[%s188 + $0x198] sm:$0xff]
          %v354 = vld [vmem:[%s188 + $0x1a0] sm:$0xff]
          %v355 = vld [vmem:[%s188 + $0x1a8] sm:$0xff]
          %v356 = vld [vmem:[%s188 + $0x1b0] sm:$0xff]
          %v357 = vld [vmem:[%s188 + $0x1b8] sm:$0xff]
          %v358 = vld [vmem:[%s188 + $0x1c0] sm:$0xff]
          %v359 = vld [vmem:[%s188 + $0x1c8] sm:$0xff]
          %v360 = vld [vmem:[%s188 + $0x1d0] sm:$0xff]
          %v361 = vld [vmem:[%s188 + $0x1d8] sm:$0xff]
          %v362 = vld [vmem:[%s188 + $0x1e0] sm:$0xff]
          %v363 = vld [vmem:[%s188 + $0x1e8] sm:$0xff]
          %v364 = vld [vmem:[%s188 + $0x1f0] sm:$0xff]
          %v365 = vld [vmem:[%s188 + $0x1f8] sm:$0xff]
          %v366 = vld [vmem:[%s197] sm:$0xff]
          %v367 = vld [vmem:[%s197 + $0x8] sm:$0xff]
          %v368 = vld [vmem:[%s197 + $0x10] sm:$0xff]
          %v369 = vld [vmem:[%s197 + $0x18] sm:$0xff]
          %v370 = vld [vmem:[%s197 + $0x20] sm:$0xff]
          %v371 = vld [vmem:[%s197 + $0x28] sm:$0xff]
          %v372 = vld [vmem:[%s197 + $0x30] sm:$0xff]
          %v373 = vld [vmem:[%s197 + $0x38] sm:$0xff]
          %v374 = vld [vmem:[%s197 + $0x40] sm:$0xff]
          %v375 = vld [vmem:[%s197 + $0x48] sm:$0xff]
          %v376 = vld [vmem:[%s197 + $0x50] sm:$0xff]
          %v377 = vld [vmem:[%s197 + $0x58] sm:$0xff]
          %v378 = vld [vmem:[%s197 + $0x60] sm:$0xff]
          %v379 = vld [vmem:[%s197 + $0x68] sm:$0xff]
          %v380 = vld [vmem:[%s197 + $0x70] sm:$0xff]
          %v381 = vld [vmem:[%s197 + $0x78] sm:$0xff]
          %v382 = vld [vmem:[%s197 + $0x80] sm:$0xff]
          %v383 = vld [vmem:[%s197 + $0x88] sm:$0xff]
          %v384 = vld [vmem:[%s197 + $0x90] sm:$0xff]
          %v385 = vld [vmem:[%s197 + $0x98] sm:$0xff]
          %v386 = vld [vmem:[%s197 + $0xa0] sm:$0xff]
          %v387 = vld [vmem:[%s197 + $0xa8] sm:$0xff]
          %v388 = vld [vmem:[%s197 + $0xb0] sm:$0xff]
          %v389 = vld [vmem:[%s197 + $0xb8] sm:$0xff]
          %v390 = vld [vmem:[%s197 + $0xc0] sm:$0xff]
          %v391 = vld [vmem:[%s197 + $0xc8] sm:$0xff]
          %v392 = vld [vmem:[%s197 + $0xd0] sm:$0xff]
          %v393 = vld [vmem:[%s197 + $0xd8] sm:$0xff]
          %v394 = vld [vmem:[%s197 + $0xe0] sm:$0xff]
          %v395 = vld [vmem:[%s197 + $0xe8] sm:$0xff]
          %v396 = vld [vmem:[%s197 + $0xf0] sm:$0xff]
          %v397 = vld [vmem:[%s197 + $0xf8] sm:$0xff]
          %398 = vxpose.xlu0.b32.start [1/16] %v302, 128
          %399 = vxpose.xlu0.b32.cont [2/16] %v304, 128
          %400 = vxpose.xlu0.b32.cont [3/16] %v306, 128
          %401 = vxpose.xlu0.b32.cont [4/16] %v308, 128
          %402 = vxpose.xlu0.b32.cont [5/16] %v310, 128
          %403 = vxpose.xlu0.b32.cont [6/16] %v312, 128
          %404 = vxpose.xlu0.b32.cont [7/16] %v314, 128
          %405 = vxpose.xlu0.b32.cont [8/16] %v316, 128
          %406 = vxpose.xlu0.b32.cont [9/16] %v318, 128
          %407 = vxpose.xlu0.b32.cont [10/16] %v320, 128
          %408 = vxpose.xlu0.b32.cont [11/16] %v322, 128
          %409 = vxpose.xlu0.b32.cont [12/16] %v324, 128
          %410 = vxpose.xlu0.b32.cont [13/16] %v326, 128
          %411 = vxpose.xlu0.b32.cont [14/16] %v328, 128
          %412 = vxpose.xlu0.b32.cont [15/16] %v330, 128
          %413 = vxpose.xlu0.b32.end [16/16] %v332, 128
          %v414 = vpop.trf.xlu0
          %v415 = vpop.trf.xlu0
          %v416 = vpop.trf.xlu0
          %v417 = vpop.trf.xlu0
          %v418 = vpop.trf.xlu0
          %v419 = vpop.trf.xlu0
          %v420 = vpop.trf.xlu0
          %v421 = vpop.trf.xlu0
          %v422 = vpop.trf.xlu0
          %v423 = vpop.trf.xlu0
          %v424 = vpop.trf.xlu0
          %v425 = vpop.trf.xlu0
          %v426 = vpop.trf.xlu0
          %v427 = vpop.trf.xlu0
          %v428 = vpop.trf.xlu0
          %v429 = vpop.trf.xlu0
          %430 = vxpose.xlu0.b32.start [1/16] %v303, 128
          %431 = vxpose.xlu0.b32.cont [2/16] %v305, 128
          %432 = vxpose.xlu0.b32.cont [3/16] %v307, 128
          %433 = vxpose.xlu0.b32.cont [4/16] %v309, 128
          %434 = vxpose.xlu0.b32.cont [5/16] %v311, 128
          %435 = vxpose.xlu0.b32.cont [6/16] %v313, 128
          %436 = vxpose.xlu0.b32.cont [7/16] %v315, 128
          %437 = vxpose.xlu0.b32.cont [8/16] %v317, 128
          %438 = vxpose.xlu0.b32.cont [9/16] %v319, 128
          %439 = vxpose.xlu0.b32.cont [10/16] %v321, 128
          %440 = vxpose.xlu0.b32.cont [11/16] %v323, 128
          %441 = vxpose.xlu0.b32.cont [12/16] %v325, 128
          %442 = vxpose.xlu0.b32.cont [13/16] %v327, 128
          %443 = vxpose.xlu0.b32.cont [14/16] %v329, 128
          %444 = vxpose.xlu0.b32.cont [15/16] %v331, 128
          %445 = vxpose.xlu0.b32.end [16/16] %v333, 128
          %v446 = vpop.trf.xlu0
          %v447 = vpop.trf.xlu0
          %v448 = vpop.trf.xlu0
          %v449 = vpop.trf.xlu0
          %v450 = vpop.trf.xlu0
          %v451 = vpop.trf.xlu0
          %v452 = vpop.trf.xlu0
          %v453 = vpop.trf.xlu0
          %v454 = vpop.trf.xlu0
          %v455 = vpop.trf.xlu0
          %v456 = vpop.trf.xlu0
          %v457 = vpop.trf.xlu0
          %v458 = vpop.trf.xlu0
          %v459 = vpop.trf.xlu0
          %v460 = vpop.trf.xlu0
          %v461 = vpop.trf.xlu0
          %462 = vxpose.xlu0.b32.start [1/16] %v334, 128
          %463 = vxpose.xlu0.b32.cont [2/16] %v336, 128
          %464 = vxpose.xlu0.b32.cont [3/16] %v338, 128
          %465 = vxpose.xlu0.b32.cont [4/16] %v340, 128
          %466 = vxpose.xlu0.b32.cont [5/16] %v342, 128
          %467 = vxpose.xlu0.b32.cont [6/16] %v344, 128
          %468 = vxpose.xlu0.b32.cont [7/16] %v346, 128
          %469 = vxpose.xlu0.b32.cont [8/16] %v348, 128
          %470 = vxpose.xlu0.b32.cont [9/16] %v350, 128
          %471 = vxpose.xlu0.b32.cont [10/16] %v352, 128
          %472 = vxpose.xlu0.b32.cont [11/16] %v354, 128
          %473 = vxpose.xlu0.b32.cont [12/16] %v356, 128
          %474 = vxpose.xlu0.b32.cont [13/16] %v358, 128
          %475 = vxpose.xlu0.b32.cont [14/16] %v360, 128
          %476 = vxpose.xlu0.b32.cont [15/16] %v362, 128
          %477 = vxpose.xlu0.b32.end [16/16] %v364, 128
          %v478 = vpop.trf.xlu0
          %v479 = vpop.trf.xlu0
          %v480 = vpop.trf.xlu0
          %v481 = vpop.trf.xlu0
          %v482 = vpop.trf.xlu0
          %v483 = vpop.trf.xlu0
          %v484 = vpop.trf.xlu0
          %v485 = vpop.trf.xlu0
          %v486 = vpop.trf.xlu0
          %v487 = vpop.trf.xlu0
          %v488 = vpop.trf.xlu0
          %v489 = vpop.trf.xlu0
          %v490 = vpop.trf.xlu0
          %v491 = vpop.trf.xlu0
          %v492 = vpop.trf.xlu0
          %v493 = vpop.trf.xlu0
          %494 = vxpose.xlu0.b32.start [1/16] %v335, 128
          %495 = vxpose.xlu0.b32.cont [2/16] %v337, 128
          %496 = vxpose.xlu0.b32.cont [3/16] %v339, 128
          %497 = vxpose.xlu0.b32.cont [4/16] %v341, 128
          %498 = vxpose.xlu0.b32.cont [5/16] %v343, 128
          %499 = vxpose.xlu0.b32.cont [6/16] %v345, 128
          %500 = vxpose.xlu0.b32.cont [7/16] %v347, 128
          %501 = vxpose.xlu0.b32.cont [8/16] %v349, 128
          %502 = vxpose.xlu0.b32.cont [9/16] %v351, 128
          %503 = vxpose.xlu0.b32.cont [10/16] %v353, 128
          %504 = vxpose.xlu0.b32.cont [11/16] %v355, 128
          %505 = vxpose.xlu0.b32.cont [12/16] %v357, 128
          %506 = vxpose.xlu0.b32.cont [13/16] %v359, 128
          %507 = vxpose.xlu0.b32.cont [14/16] %v361, 128
          %508 = vxpose.xlu0.b32.cont [15/16] %v363, 128
          %509 = vxpose.xlu0.b32.end [16/16] %v365, 128
          %v510 = vpop.trf.xlu0
          %v511 = vpop.trf.xlu0
          %v512 = vpop.trf.xlu0
          %v513 = vpop.trf.xlu0
          %v514 = vpop.trf.xlu0
          %v515 = vpop.trf.xlu0
          %v516 = vpop.trf.xlu0
          %v517 = vpop.trf.xlu0
          %v518 = vpop.trf.xlu0
          %v519 = vpop.trf.xlu0
          %v520 = vpop.trf.xlu0
          %v521 = vpop.trf.xlu0
          %v522 = vpop.trf.xlu0
          %v523 = vpop.trf.xlu0
          %v524 = vpop.trf.xlu0
          %v525 = vpop.trf.xlu0
          %526 = vmatprep.subr.mxu0 0.0
          %527 = vmatpush1.msra.mxu0 %v381
          %528 = vmatprep.subr.mxu0 0.0
          %529 = vmatpush1.msra.mxu0 %v380
          %530 = vmatprep.subr.mxu0 0.0
          %531 = vmatpush1.msra.mxu0 %v379
          %532 = vmatprep.subr.mxu0 0.0
          %533 = vmatpush1.msra.mxu0 %v378
          %534 = vmatprep.subr.mxu0 0.0
          %535 = vmatpush1.msra.mxu0 %v377
          %536 = vmatprep.subr.mxu0 0.0
          %537 = vmatpush1.msra.mxu0 %v376
          %538 = vmatprep.subr.mxu0 0.0
          %539 = vmatpush1.msra.mxu0 %v375
          %540 = vmatprep.subr.mxu0 0.0
          %541 = vmatpush1.msra.mxu0 %v374
          %542 = vmatprep.subr.mxu0 0.0
          %543 = vmatpush1.msra.mxu0 %v373
          %544 = vmatprep.subr.mxu0 0.0
          %545 = vmatpush1.msra.mxu0 %v372
          %546 = vmatprep.subr.mxu0 0.0
          %547 = vmatpush1.msra.mxu0 %v371
          %548 = vmatprep.subr.mxu0 0.0
          %549 = vmatpush1.msra.mxu0 %v370
          %550 = vmatprep.subr.mxu0 0.0
          %551 = vmatpush1.msra.mxu0 %v369
          %552 = vmatprep.subr.mxu0 0.0
          %553 = vmatpush1.msra.mxu0 %v368
          %554 = vmatprep.subr.mxu0 0.0
          %555 = vmatpush1.msra.mxu0 %v367
          %556 = vmatprep.subr.mxu0 0.0
          %557 = vmatpush1.msra.mxu0 %v366
          %558 = vmatprep.subr.mxu0 0.0
          %559 = vmatpush2.msra.mxu0 %v397
          %560 = vmatprep.subr.mxu0 0.0
          %561 = vmatpush2.msra.mxu0 %v396
          %562 = vmatprep.subr.mxu0 0.0
          %563 = vmatpush2.msra.mxu0 %v395
          %564 = vmatprep.subr.mxu0 0.0
          %565 = vmatpush2.msra.mxu0 %v394
          %566 = vmatprep.subr.mxu0 0.0
          %567 = vmatpush2.msra.mxu0 %v393
          %568 = vmatprep.subr.mxu0 0.0
          %569 = vmatpush2.msra.mxu0 %v392
          %570 = vmatprep.subr.mxu0 0.0
          %571 = vmatpush2.msra.mxu0 %v391
          %572 = vmatprep.subr.mxu0 0.0
          %573 = vmatpush2.msra.mxu0 %v390
          %574 = vmatprep.subr.mxu0 0.0
          %575 = vmatpush2.msra.mxu0 %v389
          %576 = vmatprep.subr.mxu0 0.0
          %577 = vmatpush2.msra.mxu0 %v388
          %578 = vmatprep.subr.mxu0 0.0
          %579 = vmatpush2.msra.mxu0 %v387
          %580 = vmatprep.subr.mxu0 0.0
          %581 = vmatpush2.msra.mxu0 %v386
          %582 = vmatprep.subr.mxu0 0.0
          %583 = vmatpush2.msra.mxu0 %v385
          %584 = vmatprep.subr.mxu0 0.0
          %585 = vmatpush2.msra.mxu0 %v384
          %586 = vmatprep.subr.mxu0 0.0
          %587 = vmatpush2.msra.mxu0 %v383
          %588 = vmatprep.subr.mxu0 0.0
          %589 = vmatpush2.msra.mxu0 %v382
          %590 = vmatprep.mubr.f32.mxu0 %v478
          %591 = vmatmul.mubr.f32.gmra.mxu0 %v414
          %v592 = vpop.f32.mrf.mxu0
          %v593 = vadd.f32 0.0, %v592
          %v594 = vpop.f32.mrf.mxu0
          %595 = vmatprep.mubr.f32.mxu0 %v479
          %596 = vmatmul.mubr.f32.gmra.mxu0 %v415
          %v597 = vpop.f32.mrf.mxu0
          %v598 = vadd.f32 0.0, %v597
          %v599 = vpop.f32.mrf.mxu0
          %600 = vmatprep.mubr.f32.mxu0 %v480
          %601 = vmatmul.mubr.f32.gmra.mxu0 %v416
          %v602 = vpop.f32.mrf.mxu0
          %v603 = vadd.f32 0.0, %v602
          %v604 = vpop.f32.mrf.mxu0
          %605 = vmatprep.mubr.f32.mxu0 %v481
          %606 = vmatmul.mubr.f32.gmra.mxu0 %v417
          %v607 = vpop.f32.mrf.mxu0
          %v608 = vadd.f32 0.0, %v607
          %v609 = vpop.f32.mrf.mxu0
          %610 = vmatprep.mubr.f32.mxu0 %v482
          %611 = vmatmul.mubr.f32.gmra.mxu0 %v418
          %v612 = vpop.f32.mrf.mxu0
          %v613 = vadd.f32 0.0, %v612
          %v614 = vpop.f32.mrf.mxu0
          %615 = vmatprep.mubr.f32.mxu0 %v483
          %616 = vmatmul.mubr.f32.gmra.mxu0 %v419
          %v617 = vpop.f32.mrf.mxu0
          %v618 = vadd.f32 0.0, %v617
          %v619 = vpop.f32.mrf.mxu0
          %620 = vmatprep.mubr.f32.mxu0 %v484
          %621 = vmatmul.mubr.f32.gmra.mxu0 %v420
          %v622 = vpop.f32.mrf.mxu0
          %v623 = vadd.f32 0.0, %v622
          %v624 = vpop.f32.mrf.mxu0
          %625 = vmatprep.mubr.f32.mxu0 %v485
          %626 = vmatmul.mubr.f32.gmra.mxu0 %v421
          %v627 = vpop.f32.mrf.mxu0
          %v628 = vadd.f32 0.0, %v627
          %v629 = vpop.f32.mrf.mxu0
          %630 = vmatprep.mubr.f32.mxu0 %v486
          %631 = vmatmul.mubr.f32.gmra.mxu0 %v422
          %v632 = vpop.f32.mrf.mxu0
          %v633 = vadd.f32 0.0, %v632
          %v634 = vpop.f32.mrf.mxu0
          %635 = vmatprep.mubr.f32.mxu0 %v487
          %636 = vmatmul.mubr.f32.gmra.mxu0 %v423
          %v637 = vpop.f32.mrf.mxu0
          %v638 = vadd.f32 0.0, %v637
          %v639 = vpop.f32.mrf.mxu0
          %640 = vmatprep.mubr.f32.mxu0 %v488
          %641 = vmatmul.mubr.f32.gmra.mxu0 %v424
          %v642 = vpop.f32.mrf.mxu0
          %v643 = vadd.f32 0.0, %v642
          %v644 = vpop.f32.mrf.mxu0
          %645 = vmatprep.mubr.f32.mxu0 %v489
          %646 = vmatmul.mubr.f32.gmra.mxu0 %v425
          %v647 = vpop.f32.mrf.mxu0
          %v648 = vadd.f32 0.0, %v647
          %v649 = vpop.f32.mrf.mxu0
          %650 = vmatprep.mubr.f32.mxu0 %v490
          %651 = vmatmul.mubr.f32.gmra.mxu0 %v426
          %v652 = vpop.f32.mrf.mxu0
          %v653 = vadd.f32 0.0, %v652
          %v654 = vpop.f32.mrf.mxu0
          %655 = vmatprep.mubr.f32.mxu0 %v491
          %656 = vmatmul.mubr.f32.gmra.mxu0 %v427
          %v657 = vpop.f32.mrf.mxu0
          %v658 = vadd.f32 0.0, %v657
          %v659 = vpop.f32.mrf.mxu0
          %660 = vmatprep.mubr.f32.mxu0 %v492
          %661 = vmatmul.mubr.f32.gmra.mxu0 %v428
          %v662 = vpop.f32.mrf.mxu0
          %v663 = vadd.f32 0.0, %v662
          %v664 = vpop.f32.mrf.mxu0
          %665 = vmatprep.mubr.f32.mxu0 %v493
          %666 = vmatmul.mubr.f32.gmra.mxu0 %v429
          %v667 = vpop.f32.mrf.mxu0
          %v668 = vadd.f32 0.0, %v667
          %v669 = vpop.f32.mrf.mxu0
          %670 = vmatprep.mubr.f32.mxu0 %v510
          %671 = vmatmul.mubr.f32.gmra.mxu0 %v446
          %v672 = vpop.f32.mrf.mxu0
          %v673 = vadd.f32 0.0, %v672
          %v674 = vpop.f32.mrf.mxu0
          %675 = vmatprep.mubr.f32.mxu0 %v511
          %676 = vmatmul.mubr.f32.gmra.mxu0 %v447
          %v677 = vpop.f32.mrf.mxu0
          %v678 = vadd.f32 0.0, %v677
          %v679 = vpop.f32.mrf.mxu0
          %680 = vmatprep.mubr.f32.mxu0 %v512
          %681 = vmatmul.mubr.f32.gmra.mxu0 %v448
          %v682 = vpop.f32.mrf.mxu0
          %v683 = vadd.f32 0.0, %v682
          %v684 = vpop.f32.mrf.mxu0
          %685 = vmatprep.mubr.f32.mxu0 %v513
          %686 = vmatmul.mubr.f32.gmra.mxu0 %v449
          %v687 = vpop.f32.mrf.mxu0
          %v688 = vadd.f32 0.0, %v687
          %v689 = vpop.f32.mrf.mxu0
          %690 = vmatprep.mubr.f32.mxu0 %v514
          %691 = vmatmul.mubr.f32.gmra.mxu0 %v450
          %v692 = vpop.f32.mrf.mxu0
          %v693 = vadd.f32 0.0, %v692
          %v694 = vpop.f32.mrf.mxu0
          %695 = vmatprep.mubr.f32.mxu0 %v515
          %696 = vmatmul.mubr.f32.gmra.mxu0 %v451
          %v697 = vpop.f32.mrf.mxu0
          %v698 = vadd.f32 0.0, %v697
          %v699 = vpop.f32.mrf.mxu0
          %700 = vmatprep.mubr.f32.mxu0 %v516
          %701 = vmatmul.mubr.f32.gmra.mxu0 %v452
          %v702 = vpop.f32.mrf.mxu0
          %v703 = vadd.f32 0.0, %v702
          %v704 = vpop.f32.mrf.mxu0
          %705 = vmatprep.mubr.f32.mxu0 %v517
          %706 = vmatmul.mubr.f32.gmra.mxu0 %v453
          %v707 = vpop.f32.mrf.mxu0
          %v708 = vadd.f32 0.0, %v707
          %v709 = vpop.f32.mrf.mxu0
          %710 = vmatprep.mubr.f32.mxu0 %v518
          %711 = vmatmul.mubr.f32.gmra.mxu0 %v454
          %v712 = vpop.f32.mrf.mxu0
          %v713 = vadd.f32 0.0, %v712
          %v714 = vpop.f32.mrf.mxu0
          %715 = vmatprep.mubr.f32.mxu0 %v519
          %716 = vmatmul.mubr.f32.gmra.mxu0 %v455
          %v717 = vpop.f32.mrf.mxu0
          %v718 = vadd.f32 0.0, %v717
          %v719 = vpop.f32.mrf.mxu0
          %720 = vmatprep.mubr.f32.mxu0 %v520
          %721 = vmatmul.mubr.f32.gmra.mxu0 %v456
          %v722 = vpop.f32.mrf.mxu0
          %v723 = vadd.f32 0.0, %v722
          %v724 = vpop.f32.mrf.mxu0
          %725 = vmatprep.mubr.f32.mxu0 %v521
          %726 = vmatmul.mubr.f32.gmra.mxu0 %v457
          %v727 = vpop.f32.mrf.mxu0
          %v728 = vadd.f32 0.0, %v727
          %v729 = vpop.f32.mrf.mxu0
          %730 = vmatprep.mubr.f32.mxu0 %v522
          %731 = vmatmul.mubr.f32.gmra.mxu0 %v458
          %v732 = vpop.f32.mrf.mxu0
          %v733 = vadd.f32 0.0, %v732
          %v734 = vpop.f32.mrf.mxu0
          %735 = vmatprep.mubr.f32.mxu0 %v523
          %736 = vmatmul.mubr.f32.gmra.mxu0 %v459
          %v737 = vpop.f32.mrf.mxu0
          %v738 = vadd.f32 0.0, %v737
          %v739 = vpop.f32.mrf.mxu0
          %740 = vmatprep.mubr.f32.mxu0 %v524
          %741 = vmatmul.mubr.f32.gmra.mxu0 %v460
          %v742 = vpop.f32.mrf.mxu0
          %v743 = vadd.f32 0.0, %v742
          %v744 = vpop.f32.mrf.mxu0
          %745 = vmatprep.mubr.f32.mxu0 %v525
          %746 = vmatmul.mubr.f32.gmra.mxu0 %v461
          %v747 = vpop.f32.mrf.mxu0
          %v748 = vadd.f32 0.0, %v747
          %v749 = vpop.f32.mrf.mxu0
          %750 = vdwg.mxu0
          %v751 = vadd.f32 %v270, %v593
          %v752 = vadd.f32 %v271, %v598
          %v753 = vadd.f32 %v272, %v603
          %v754 = vadd.f32 %v273, %v608
          %v755 = vadd.f32 %v274, %v613
          %v756 = vadd.f32 %v275, %v618
          %v757 = vadd.f32 %v276, %v623
          %v758 = vadd.f32 %v277, %v628
          %v759 = vadd.f32 %v278, %v633
          %v760 = vadd.f32 %v279, %v638
          %v761 = vadd.f32 %v280, %v643
          %v762 = vadd.f32 %v281, %v648
          %v763 = vadd.f32 %v282, %v653
          %v764 = vadd.f32 %v283, %v658
          %v765 = vadd.f32 %v284, %v663
          %v766 = vadd.f32 %v285, %v668
          %v767 = vadd.f32 %v286, %v673
          %v768 = vadd.f32 %v287, %v678
          %v769 = vadd.f32 %v288, %v683
          %v770 = vadd.f32 %v289, %v688
          %v771 = vadd.f32 %v290, %v693
          %v772 = vadd.f32 %v291, %v698
          %v773 = vadd.f32 %v292, %v703
          %v774 = vadd.f32 %v293, %v708
          %v775 = vadd.f32 %v294, %v713
          %v776 = vadd.f32 %v295, %v718
          %v777 = vadd.f32 %v296, %v723
          %v778 = vadd.f32 %v297, %v728
          %v779 = vadd.f32 %v298, %v733
          %v780 = vadd.f32 %v299, %v738
          %v781 = vadd.f32 %v300, %v743
          %v782 = vadd.f32 %v301, %v748
          %783 = vst [vmem:[#allocation2] sm:$0xff] %v751
          %784 = vst [vmem:[#allocation2 + $0x8] sm:$0xff] %v752
          %785 = vst [vmem:[#allocation2 + $0x10] sm:$0xff] %v753
          %786 = vst [vmem:[#allocation2 + $0x18] sm:$0xff] %v754
          %787 = vst [vmem:[#allocation2 + $0x20] sm:$0xff] %v755
          %788 = vst [vmem:[#allocation2 + $0x28] sm:$0xff] %v756
          %789 = vst [vmem:[#allocation2 + $0x30] sm:$0xff] %v757
          %790 = vst [vmem:[#allocation2 + $0x38] sm:$0xff] %v758
          %791 = vst [vmem:[#allocation2 + $0x40] sm:$0xff] %v759
          %792 = vst [vmem:[#allocation2 + $0x48] sm:$0xff] %v760
          %793 = vst [vmem:[#allocation2 + $0x50] sm:$0xff] %v761
          %794 = vst [vmem:[#allocation2 + $0x58] sm:$0xff] %v762
          %795 = vst [vmem:[#allocation2 + $0x60] sm:$0xff] %v763
          %796 = vst [vmem:[#allocation2 + $0x68] sm:$0xff] %v764
          %797 = vst [vmem:[#allocation2 + $0x70] sm:$0xff] %v765
          %798 = vst [vmem:[#allocation2 + $0x78] sm:$0xff] %v766
          %799 = vst [vmem:[#allocation2 + $0x80] sm:$0xff] %v767
          %800 = vst [vmem:[#allocation2 + $0x88] sm:$0xff] %v768
          %801 = vst [vmem:[#allocation2 + $0x90] sm:$0xff] %v769
          %802 = vst [vmem:[#allocation2 + $0x98] sm:$0xff] %v770
          %803 = vst [vmem:[#allocation2 + $0xa0] sm:$0xff] %v771
          %804 = vst [vmem:[#allocation2 + $0xa8] sm:$0xff] %v772
          %805 = vst [vmem:[#allocation2 + $0xb0] sm:$0xff] %v773
          %806 = vst [vmem:[#allocation2 + $0xb8] sm:$0xff] %v774
          %807 = vst [vmem:[#allocation2 + $0xc0] sm:$0xff] %v775
          %808 = vst [vmem:[#allocation2 + $0xc8] sm:$0xff] %v776
          %809 = vst [vmem:[#allocation2 + $0xd0] sm:$0xff] %v777
          %810 = vst [vmem:[#allocation2 + $0xd8] sm:$0xff] %v778
          %811 = vst [vmem:[#allocation2 + $0xe0] sm:$0xff] %v779
          %812 = vst [vmem:[#allocation2 + $0xe8] sm:$0xff] %v780
          %813 = vst [vmem:[#allocation2 + $0xf0] sm:$0xff] %v781
          %814 = vst [vmem:[#allocation2 + $0xf8] sm:$0xff] %v782
        $region44: #{tpu_custom_call.1} parent=27 // pred_fallthru
          _
        %p815 = scmp.eq.s32.totalorder %s26, 1
        // Predicated region
        $region45: #{tpu_custom_call.1} parent=27 // pred_check
          %p816 = pneg %p815
        $region46: #{tpu_custom_call.1} parent=27 // pred_check_branch
          %818 = sbr.rel (%p816) target = $region48
        $region47: #{tpu_custom_call.1} parent=27 // pred_region
          %v819 = vld [vmem:[#allocation2] sm:$0xff]
          %v820 = vld [vmem:[#allocation2 + $0x8] sm:$0xff]
          %v821 = vld [vmem:[#allocation2 + $0x10] sm:$0xff]
          %v822 = vld [vmem:[#allocation2 + $0x18] sm:$0xff]
          %v823 = vld [vmem:[#allocation2 + $0x20] sm:$0xff]
          %v824 = vld [vmem:[#allocation2 + $0x28] sm:$0xff]
          %v825 = vld [vmem:[#allocation2 + $0x30] sm:$0xff]
          %v826 = vld [vmem:[#allocation2 + $0x38] sm:$0xff]
          %v827 = vld [vmem:[#allocation2 + $0x40] sm:$0xff]
          %v828 = vld [vmem:[#allocation2 + $0x48] sm:$0xff]
          %v829 = vld [vmem:[#allocation2 + $0x50] sm:$0xff]
          %v830 = vld [vmem:[#allocation2 + $0x58] sm:$0xff]
          %v831 = vld [vmem:[#allocation2 + $0x60] sm:$0xff]
          %v832 = vld [vmem:[#allocation2 + $0x68] sm:$0xff]
          %v833 = vld [vmem:[#allocation2 + $0x70] sm:$0xff]
          %v834 = vld [vmem:[#allocation2 + $0x78] sm:$0xff]
          %v835 = vld [vmem:[#allocation2 + $0x80] sm:$0xff]
          %v836 = vld [vmem:[#allocation2 + $0x88] sm:$0xff]
          %v837 = vld [vmem:[#allocation2 + $0x90] sm:$0xff]
          %v838 = vld [vmem:[#allocation2 + $0x98] sm:$0xff]
          %v839 = vld [vmem:[#allocation2 + $0xa0] sm:$0xff]
          %v840 = vld [vmem:[#allocation2 + $0xa8] sm:$0xff]
          %v841 = vld [vmem:[#allocation2 + $0xb0] sm:$0xff]
          %v842 = vld [vmem:[#allocation2 + $0xb8] sm:$0xff]
          %v843 = vld [vmem:[#allocation2 + $0xc0] sm:$0xff]
          %v844 = vld [vmem:[#allocation2 + $0xc8] sm:$0xff]
          %v845 = vld [vmem:[#allocation2 + $0xd0] sm:$0xff]
          %v846 = vld [vmem:[#allocation2 + $0xd8] sm:$0xff]
          %v847 = vld [vmem:[#allocation2 + $0xe0] sm:$0xff]
          %v848 = vld [vmem:[#allocation2 + $0xe8] sm:$0xff]
          %v849 = vld [vmem:[#allocation2 + $0xf0] sm:$0xff]
          %v850 = vld [vmem:[#allocation2 + $0xf8] sm:$0xff]
          %v851 = vld [vmem:[%s188] sm:$0xff]
          %v852 = vld [vmem:[%s188 + $0x8] sm:$0xff]
          %v853 = vld [vmem:[%s188 + $0x10] sm:$0xff]
          %v854 = vld [vmem:[%s188 + $0x18] sm:$0xff]
          %v855 = vld [vmem:[%s188 + $0x20] sm:$0xff]
          %v856 = vld [vmem:[%s188 + $0x28] sm:$0xff]
          %v857 = vld [vmem:[%s188 + $0x30] sm:$0xff]
          %v858 = vld [vmem:[%s188 + $0x38] sm:$0xff]
          %v859 = vld [vmem:[%s188 + $0x40] sm:$0xff]
          %v860 = vld [vmem:[%s188 + $0x48] sm:$0xff]
          %v861 = vld [vmem:[%s188 + $0x50] sm:$0xff]
          %v862 = vld [vmem:[%s188 + $0x58] sm:$0xff]
          %v863 = vld [vmem:[%s188 + $0x60] sm:$0xff]
          %v864 = vld [vmem:[%s188 + $0x68] sm:$0xff]
          %v865 = vld [vmem:[%s188 + $0x70] sm:$0xff]
          %v866 = vld [vmem:[%s188 + $0x78] sm:$0xff]
          %v867 = vld [vmem:[%s188 + $0x80] sm:$0xff]
          %v868 = vld [vmem:[%s188 + $0x88] sm:$0xff]
          %v869 = vld [vmem:[%s188 + $0x90] sm:$0xff]
          %v870 = vld [vmem:[%s188 + $0x98] sm:$0xff]
          %v871 = vld [vmem:[%s188 + $0xa0] sm:$0xff]
          %v872 = vld [vmem:[%s188 + $0xa8] sm:$0xff]
          %v873 = vld [vmem:[%s188 + $0xb0] sm:$0xff]
          %v874 = vld [vmem:[%s188 + $0xb8] sm:$0xff]
          %v875 = vld [vmem:[%s188 + $0xc0] sm:$0xff]
          %v876 = vld [vmem:[%s188 + $0xc8] sm:$0xff]
          %v877 = vld [vmem:[%s188 + $0xd0] sm:$0xff]
          %v878 = vld [vmem:[%s188 + $0xd8] sm:$0xff]
          %v879 = vld [vmem:[%s188 + $0xe0] sm:$0xff]
          %v880 = vld [vmem:[%s188 + $0xe8] sm:$0xff]
          %v881 = vld [vmem:[%s188 + $0xf0] sm:$0xff]
          %v882 = vld [vmem:[%s188 + $0xf8] sm:$0xff]
          %v883 = vld [vmem:[%s188 + $0x100] sm:$0xff]
          %v884 = vld [vmem:[%s188 + $0x108] sm:$0xff]
          %v885 = vld [vmem:[%s188 + $0x110] sm:$0xff]
          %v886 = vld [vmem:[%s188 + $0x118] sm:$0xff]
          %v887 = vld [vmem:[%s188 + $0x120] sm:$0xff]
          %v888 = vld [vmem:[%s188 + $0x128] sm:$0xff]
          %v889 = vld [vmem:[%s188 + $0x130] sm:$0xff]
          %v890 = vld [vmem:[%s188 + $0x138] sm:$0xff]
          %v891 = vld [vmem:[%s188 + $0x140] sm:$0xff]
          %v892 = vld [vmem:[%s188 + $0x148] sm:$0xff]
          %v893 = vld [vmem:[%s188 + $0x150] sm:$0xff]
          %v894 = vld [vmem:[%s188 + $0x158] sm:$0xff]
          %v895 = vld [vmem:[%s188 + $0x160] sm:$0xff]
          %v896 = vld [vmem:[%s188 + $0x168] sm:$0xff]
          %v897 = vld [vmem:[%s188 + $0x170] sm:$0xff]
          %v898 = vld [vmem:[%s188 + $0x178] sm:$0xff]
          %v899 = vld [vmem:[%s188 + $0x180] sm:$0xff]
          %v900 = vld [vmem:[%s188 + $0x188] sm:$0xff]
          %v901 = vld [vmem:[%s188 + $0x190] sm:$0xff]
          %v902 = vld [vmem:[%s188 + $0x198] sm:$0xff]
          %v903 = vld [vmem:[%s188 + $0x1a0] sm:$0xff]
          %v904 = vld [vmem:[%s188 + $0x1a8] sm:$0xff]
          %v905 = vld [vmem:[%s188 + $0x1b0] sm:$0xff]
          %v906 = vld [vmem:[%s188 + $0x1b8] sm:$0xff]
          %v907 = vld [vmem:[%s188 + $0x1c0] sm:$0xff]
          %v908 = vld [vmem:[%s188 + $0x1c8] sm:$0xff]
          %v909 = vld [vmem:[%s188 + $0x1d0] sm:$0xff]
          %v910 = vld [vmem:[%s188 + $0x1d8] sm:$0xff]
          %v911 = vld [vmem:[%s188 + $0x1e0] sm:$0xff]
          %v912 = vld [vmem:[%s188 + $0x1e8] sm:$0xff]
          %v913 = vld [vmem:[%s188 + $0x1f0] sm:$0xff]
          %v914 = vld [vmem:[%s188 + $0x1f8] sm:$0xff]
          %915 = vmatprep.subr.mxu0 0.0
          %916 = vmatpush1.msra.mxu0 %v834
          %917 = vmatprep.subr.mxu0 0.0
          %918 = vmatpush1.msra.mxu0 %v833
          %919 = vmatprep.subr.mxu0 0.0
          %920 = vmatpush1.msra.mxu0 %v832
          %921 = vmatprep.subr.mxu0 0.0
          %922 = vmatpush1.msra.mxu0 %v831
          %923 = vmatprep.subr.mxu0 0.0
          %924 = vmatpush1.msra.mxu0 %v830
          %925 = vmatprep.subr.mxu0 0.0
          %926 = vmatpush1.msra.mxu0 %v829
          %927 = vmatprep.subr.mxu0 0.0
          %928 = vmatpush1.msra.mxu0 %v828
          %929 = vmatprep.subr.mxu0 0.0
          %930 = vmatpush1.msra.mxu0 %v827
          %931 = vmatprep.subr.mxu0 0.0
          %932 = vmatpush1.msra.mxu0 %v826
          %933 = vmatprep.subr.mxu0 0.0
          %934 = vmatpush1.msra.mxu0 %v825
          %935 = vmatprep.subr.mxu0 0.0
          %936 = vmatpush1.msra.mxu0 %v824
          %937 = vmatprep.subr.mxu0 0.0
          %938 = vmatpush1.msra.mxu0 %v823
          %939 = vmatprep.subr.mxu0 0.0
          %940 = vmatpush1.msra.mxu0 %v822
          %941 = vmatprep.subr.mxu0 0.0
          %942 = vmatpush1.msra.mxu0 %v821
          %943 = vmatprep.subr.mxu0 0.0
          %944 = vmatpush1.msra.mxu0 %v820
          %945 = vmatprep.subr.mxu0 0.0
          %946 = vmatpush1.msra.mxu0 %v819
          %947 = vmatprep.subr.mxu0 0.0
          %948 = vmatpush2.msra.mxu0 %v850
          %949 = vmatprep.subr.mxu0 0.0
          %950 = vmatpush2.msra.mxu0 %v849
          %951 = vmatprep.subr.mxu0 0.0
          %952 = vmatpush2.msra.mxu0 %v848
          %953 = vmatprep.subr.mxu0 0.0
          %954 = vmatpush2.msra.mxu0 %v847
          %955 = vmatprep.subr.mxu0 0.0
          %956 = vmatpush2.msra.mxu0 %v846
          %957 = vmatprep.subr.mxu0 0.0
          %958 = vmatpush2.msra.mxu0 %v845
          %959 = vmatprep.subr.mxu0 0.0
          %960 = vmatpush2.msra.mxu0 %v844
          %961 = vmatprep.subr.mxu0 0.0
          %962 = vmatpush2.msra.mxu0 %v843
          %963 = vmatprep.subr.mxu0 0.0
          %964 = vmatpush2.msra.mxu0 %v842
          %965 = vmatprep.subr.mxu0 0.0
          %966 = vmatpush2.msra.mxu0 %v841
          %967 = vmatprep.subr.mxu0 0.0
          %968 = vmatpush2.msra.mxu0 %v840
          %969 = vmatprep.subr.mxu0 0.0
          %970 = vmatpush2.msra.mxu0 %v839
          %971 = vmatprep.subr.mxu0 0.0
          %972 = vmatpush2.msra.mxu0 %v838
          %973 = vmatprep.subr.mxu0 0.0
          %974 = vmatpush2.msra.mxu0 %v837
          %975 = vmatprep.subr.mxu0 0.0
          %976 = vmatpush2.msra.mxu0 %v836
          %977 = vmatprep.subr.mxu0 0.0
          %978 = vmatpush2.msra.mxu0 %v835
          %979 = vmatprep.mubr.f32.mxu0 %v852
          %980 = vmatmul.mubr.f32.gmra.mxu0 %v851
          %v981 = vpop.f32.mrf.mxu0
          %v982 = vadd.f32 0.0, %v981
          %v983 = vpop.f32.mrf.mxu0
          %984 = vmatprep.mubr.f32.mxu0 %v854
          %985 = vmatmul.mubr.f32.gmra.mxu0 %v853
          %v986 = vpop.f32.mrf.mxu0
          %v987 = vadd.f32 0.0, %v986
          %v988 = vpop.f32.mrf.mxu0
          %989 = vmatprep.mubr.f32.mxu0 %v856
          %990 = vmatmul.mubr.f32.gmra.mxu0 %v855
          %v991 = vpop.f32.mrf.mxu0
          %v992 = vadd.f32 0.0, %v991
          %v993 = vpop.f32.mrf.mxu0
          %994 = vmatprep.mubr.f32.mxu0 %v858
          %995 = vmatmul.mubr.f32.gmra.mxu0 %v857
          %v996 = vpop.f32.mrf.mxu0
          %v997 = vadd.f32 0.0, %v996
          %v998 = vpop.f32.mrf.mxu0
          %999 = vmatprep.mubr.f32.mxu0 %v860
          %1000 = vmatmul.mubr.f32.gmra.mxu0 %v859
          %v1001 = vpop.f32.mrf.mxu0
          %v1002 = vadd.f32 0.0, %v1001
          %v1003 = vpop.f32.mrf.mxu0
          %1004 = vmatprep.mubr.f32.mxu0 %v862
          %1005 = vmatmul.mubr.f32.gmra.mxu0 %v861
          %v1006 = vpop.f32.mrf.mxu0
          %v1007 = vadd.f32 0.0, %v1006
          %v1008 = vpop.f32.mrf.mxu0
          %1009 = vmatprep.mubr.f32.mxu0 %v864
          %1010 = vmatmul.mubr.f32.gmra.mxu0 %v863
          %v1011 = vpop.f32.mrf.mxu0
          %v1012 = vadd.f32 0.0, %v1011
          %v1013 = vpop.f32.mrf.mxu0
          %1014 = vmatprep.mubr.f32.mxu0 %v866
          %1015 = vmatmul.mubr.f32.gmra.mxu0 %v865
          %v1016 = vpop.f32.mrf.mxu0
          %v1017 = vadd.f32 0.0, %v1016
          %v1018 = vpop.f32.mrf.mxu0
          %1019 = vmatprep.mubr.f32.mxu0 %v868
          %1020 = vmatmul.mubr.f32.gmra.mxu0 %v867
          %v1021 = vpop.f32.mrf.mxu0
          %v1022 = vadd.f32 0.0, %v1021
          %v1023 = vpop.f32.mrf.mxu0
          %1024 = vmatprep.mubr.f32.mxu0 %v870
          %1025 = vmatmul.mubr.f32.gmra.mxu0 %v869
          %v1026 = vpop.f32.mrf.mxu0
          %v1027 = vadd.f32 0.0, %v1026
          %v1028 = vpop.f32.mrf.mxu0
          %1029 = vmatprep.mubr.f32.mxu0 %v872
          %1030 = vmatmul.mubr.f32.gmra.mxu0 %v871
          %v1031 = vpop.f32.mrf.mxu0
          %v1032 = vadd.f32 0.0, %v1031
          %v1033 = vpop.f32.mrf.mxu0
          %1034 = vmatprep.mubr.f32.mxu0 %v874
          %1035 = vmatmul.mubr.f32.gmra.mxu0 %v873
          %v1036 = vpop.f32.mrf.mxu0
          %v1037 = vadd.f32 0.0, %v1036
          %v1038 = vpop.f32.mrf.mxu0
          %1039 = vmatprep.mubr.f32.mxu0 %v876
          %1040 = vmatmul.mubr.f32.gmra.mxu0 %v875
          %v1041 = vpop.f32.mrf.mxu0
          %v1042 = vadd.f32 0.0, %v1041
          %v1043 = vpop.f32.mrf.mxu0
          %1044 = vmatprep.mubr.f32.mxu0 %v878
          %1045 = vmatmul.mubr.f32.gmra.mxu0 %v877
          %v1046 = vpop.f32.mrf.mxu0
          %v1047 = vadd.f32 0.0, %v1046
          %v1048 = vpop.f32.mrf.mxu0
          %1049 = vmatprep.mubr.f32.mxu0 %v880
          %1050 = vmatmul.mubr.f32.gmra.mxu0 %v879
          %v1051 = vpop.f32.mrf.mxu0
          %v1052 = vadd.f32 0.0, %v1051
          %v1053 = vpop.f32.mrf.mxu0
          %1054 = vmatprep.mubr.f32.mxu0 %v882
          %1055 = vmatmul.mubr.f32.gmra.mxu0 %v881
          %v1056 = vpop.f32.mrf.mxu0
          %v1057 = vadd.f32 0.0, %v1056
          %v1058 = vpop.f32.mrf.mxu0
          %1059 = vmatprep.mubr.f32.mxu0 %v884
          %1060 = vmatmul.mubr.f32.gmra.mxu0 %v883
          %v1061 = vpop.f32.mrf.mxu0
          %v1062 = vadd.f32 0.0, %v1061
          %v1063 = vpop.f32.mrf.mxu0
          %1064 = vmatprep.mubr.f32.mxu0 %v886
          %1065 = vmatmul.mubr.f32.gmra.mxu0 %v885
          %v1066 = vpop.f32.mrf.mxu0
          %v1067 = vadd.f32 0.0, %v1066
          %v1068 = vpop.f32.mrf.mxu0
          %1069 = vmatprep.mubr.f32.mxu0 %v888
          %1070 = vmatmul.mubr.f32.gmra.mxu0 %v887
          %v1071 = vpop.f32.mrf.mxu0
          %v1072 = vadd.f32 0.0, %v1071
          %v1073 = vpop.f32.mrf.mxu0
          %1074 = vmatprep.mubr.f32.mxu0 %v890
          %1075 = vmatmul.mubr.f32.gmra.mxu0 %v889
          %v1076 = vpop.f32.mrf.mxu0
          %v1077 = vadd.f32 0.0, %v1076
          %v1078 = vpop.f32.mrf.mxu0
          %1079 = vmatprep.mubr.f32.mxu0 %v892
          %1080 = vmatmul.mubr.f32.gmra.mxu0 %v891
          %v1081 = vpop.f32.mrf.mxu0
          %v1082 = vadd.f32 0.0, %v1081
          %v1083 = vpop.f32.mrf.mxu0
          %1084 = vmatprep.mubr.f32.mxu0 %v894
          %1085 = vmatmul.mubr.f32.gmra.mxu0 %v893
          %v1086 = vpop.f32.mrf.mxu0
          %v1087 = vadd.f32 0.0, %v1086
          %v1088 = vpop.f32.mrf.mxu0
          %1089 = vmatprep.mubr.f32.mxu0 %v896
          %1090 = vmatmul.mubr.f32.gmra.mxu0 %v895
          %v1091 = vpop.f32.mrf.mxu0
          %v1092 = vadd.f32 0.0, %v1091
          %v1093 = vpop.f32.mrf.mxu0
          %1094 = vmatprep.mubr.f32.mxu0 %v898
          %1095 = vmatmul.mubr.f32.gmra.mxu0 %v897
          %v1096 = vpop.f32.mrf.mxu0
          %v1097 = vadd.f32 0.0, %v1096
          %v1098 = vpop.f32.mrf.mxu0
          %1099 = vmatprep.mubr.f32.mxu0 %v900
          %1100 = vmatmul.mubr.f32.gmra.mxu0 %v899
          %v1101 = vpop.f32.mrf.mxu0
          %v1102 = vadd.f32 0.0, %v1101
          %v1103 = vpop.f32.mrf.mxu0
          %1104 = vmatprep.mubr.f32.mxu0 %v902
          %1105 = vmatmul.mubr.f32.gmra.mxu0 %v901
          %v1106 = vpop.f32.mrf.mxu0
          %v1107 = vadd.f32 0.0, %v1106
          %v1108 = vpop.f32.mrf.mxu0
          %1109 = vmatprep.mubr.f32.mxu0 %v904
          %1110 = vmatmul.mubr.f32.gmra.mxu0 %v903
          %v1111 = vpop.f32.mrf.mxu0
          %v1112 = vadd.f32 0.0, %v1111
          %v1113 = vpop.f32.mrf.mxu0
          %1114 = vmatprep.mubr.f32.mxu0 %v906
          %1115 = vmatmul.mubr.f32.gmra.mxu0 %v905
          %v1116 = vpop.f32.mrf.mxu0
          %v1117 = vadd.f32 0.0, %v1116
          %v1118 = vpop.f32.mrf.mxu0
          %1119 = vmatprep.mubr.f32.mxu0 %v908
          %1120 = vmatmul.mubr.f32.gmra.mxu0 %v907
          %v1121 = vpop.f32.mrf.mxu0
          %v1122 = vadd.f32 0.0, %v1121
          %v1123 = vpop.f32.mrf.mxu0
          %1124 = vmatprep.mubr.f32.mxu0 %v910
          %1125 = vmatmul.mubr.f32.gmra.mxu0 %v909
          %v1126 = vpop.f32.mrf.mxu0
          %v1127 = vadd.f32 0.0, %v1126
          %v1128 = vpop.f32.mrf.mxu0
          %1129 = vmatprep.mubr.f32.mxu0 %v912
          %1130 = vmatmul.mubr.f32.gmra.mxu0 %v911
          %v1131 = vpop.f32.mrf.mxu0
          %v1132 = vadd.f32 0.0, %v1131
          %v1133 = vpop.f32.mrf.mxu0
          %1134 = vmatprep.mubr.f32.mxu0 %v914
          %1135 = vmatmul.mubr.f32.gmra.mxu0 %v913
          %v1136 = vpop.f32.mrf.mxu0
          %v1137 = vadd.f32 0.0, %v1136
          %v1138 = vpop.f32.mrf.mxu0
          %1139 = vdwg.mxu0
          %1140 = vst [vmem:[%s222] sm:$0xff] %v982
          %1141 = vst [vmem:[%s222 + $0x8] sm:$0xff] %v987
          %1142 = vst [vmem:[%s222 + $0x10] sm:$0xff] %v992
          %1143 = vst [vmem:[%s222 + $0x18] sm:$0xff] %v997
          %1144 = vst [vmem:[%s222 + $0x20] sm:$0xff] %v1002
          %1145 = vst [vmem:[%s222 + $0x28] sm:$0xff] %v1007
          %1146 = vst [vmem:[%s222 + $0x30] sm:$0xff] %v1012
          %1147 = vst [vmem:[%s222 + $0x38] sm:$0xff] %v1017
          %1148 = vst [vmem:[%s222 + $0x40] sm:$0xff] %v1022
          %1149 = vst [vmem:[%s222 + $0x48] sm:$0xff] %v1027
          %1150 = vst [vmem:[%s222 + $0x50] sm:$0xff] %v1032
          %1151 = vst [vmem:[%s222 + $0x58] sm:$0xff] %v1037
          %1152 = vst [vmem:[%s222 + $0x60] sm:$0xff] %v1042
          %1153 = vst [vmem:[%s222 + $0x68] sm:$0xff] %v1047
          %1154 = vst [vmem:[%s222 + $0x70] sm:$0xff] %v1052
          %1155 = vst [vmem:[%s222 + $0x78] sm:$0xff] %v1057
          %1156 = vst [vmem:[%s222 + $0x80] sm:$0xff] %v1062
          %1157 = vst [vmem:[%s222 + $0x88] sm:$0xff] %v1067
          %1158 = vst [vmem:[%s222 + $0x90] sm:$0xff] %v1072
          %1159 = vst [vmem:[%s222 + $0x98] sm:$0xff] %v1077
          %1160 = vst [vmem:[%s222 + $0xa0] sm:$0xff] %v1082
          %1161 = vst [vmem:[%s222 + $0xa8] sm:$0xff] %v1087
          %1162 = vst [vmem:[%s222 + $0xb0] sm:$0xff] %v1092
          %1163 = vst [vmem:[%s222 + $0xb8] sm:$0xff] %v1097
          %1164 = vst [vmem:[%s222 + $0xc0] sm:$0xff] %v1102
          %1165 = vst [vmem:[%s222 + $0xc8] sm:$0xff] %v1107
          %1166 = vst [vmem:[%s222 + $0xd0] sm:$0xff] %v1112
          %1167 = vst [vmem:[%s222 + $0xd8] sm:$0xff] %v1117
          %1168 = vst [vmem:[%s222 + $0xe0] sm:$0xff] %v1122
          %1169 = vst [vmem:[%s222 + $0xe8] sm:$0xff] %v1127
          %1170 = vst [vmem:[%s222 + $0xf0] sm:$0xff] %v1132
          %1171 = vst [vmem:[%s222 + $0xf8] sm:$0xff] %v1137
        $region48: #{tpu_custom_call.1} parent=27 // pred_fallthru
          _
        %s1172 = sand.u32 %s100, 1
        %s1173 = scalar_lea.sflag [#allocation5], %s1172
        %s1174 = sand.u32 %s100, 1
        %s1175 = smul.addr %s1174, 256
        %s1176 = scalar_lea.vmem [#allocation8], %s1175
        // Predicated region
        $region49: #{tpu_custom_call.1} parent=27 // pred_check
          %p1177 = pneg %p110
        $region50: #{tpu_custom_call.1} parent=27 // pred_check_branch
          %1179 = sbr.rel (%p1177) target = $region52
        $region51: #{tpu_custom_call.1} parent=27 // pred_region
          %s1180 = smul.u32 %s27, %s26
          %s1181 = smul.u32 32, %s1180
          %s1183 = ssub.s32 4096, 4096
          %1184 = vsyncadd %s1173, %s1183
          %s1185 = smul.addr %s1181, 128
          %s1186 = scalar_lea.hbm %s2, %s1185
          %s1187 = sshll.u32 %s1176, 4
          %s1188 = int_to_ptr.vmem [resolvable:$true] %s1187
          %1193 = dma.vmem_to_hbm [thread:$0]  %s1188, 4096, %s1186, %s1173, 128, 128, 8
        $region52: #{tpu_custom_call.1} parent=27 // pred_fallthru
          _
      $region28: #{tpu_custom_call.1} parent=5 // pred_fallthru
        _
      %p1194 = scmp.le.s32.totalorder 2, %s17
      // Predicated region
      $region53: #{tpu_custom_call.1} parent=5 // pred_check
        %p1195 = pneg %p1194
      $region54: #{tpu_custom_call.1} parent=5 // pred_check_branch
        %1197 = sbr.rel (%p1195) target = $region56
      $region55: #{tpu_custom_call.1} parent=5 // pred_region
        %s1198 = ssub.s32 %s17, 2
        // Predicated region
        $region57: #{tpu_custom_call.1} parent=55 // pred_check
          %p1199 = pneg %p116
        $region58: #{tpu_custom_call.1} parent=55 // pred_check_branch
          %1201 = sbr.rel (%p1199) target = $region60
        $region59: #{tpu_custom_call.1} parent=55 // pred_region
          %s1202 = sand.u32 %s101, 1
          %s1203 = scalar_lea.sflag [#allocation5], %s1202
          %s1204 = sand.u32 %s101, 1
          %s1205 = smul.addr %s1204, 256
          %s1206 = scalar_lea.vmem [#allocation8], %s1205
          %1207 = dma.done %s1203, 4096
        $region60: #{tpu_custom_call.1} parent=55 // pred_fallthru
          _
      $region56: #{tpu_custom_call.1} parent=5 // pred_fallthru
        _
    $region6: #{tpu_custom_call.1} parent=1 // loop_footer
      %s21 = sadd.s32 1, %s17
    $region7: #{tpu_custom_call.1} parent=1 // loop_footer_branch
      %16 = sbr.rel target = $region3
    $region8: #{tpu_custom_call.1} parent=1 // loop_exit
      _
    %1208 = vsyncpa [#allocation4], 1
    %s1209 = scalar_lea.sflag [#allocation4], 1
    %1210 = vsyncpa %s1209, 1
    %1211 = vsyncpa [#allocation7], 1
    %s1212 = scalar_lea.sflag [#allocation7], 1
    %1213 = vsyncpa %s1212, 1
    %1214 = vsyncpa [#allocation5], 1
    %s1215 = scalar_lea.sflag [#allocation5], 1
    %1216 = vsyncpa %s1215, 1

</llo_original>
